<compile_context>
chip_gen: v6e
topology: v6e:2x2x1
jax: 0.10.0
libtpu: 0.0.40
codegen_flags: <defaults>
</compile_context>

<pallas_src>
import functools

import jax
import jax.numpy as jnp
from jax.experimental import pallas as pl
from jax.experimental.pallas import tpu as pltpu


def _round_up(x: int, m: int) -> int:
    return ((x + m - 1) // m) * m


def _pick_tile(dim: int, preferred: int) -> int:
    """Largest multiple of 128 <= preferred that divides dim (dim % 128 == 0)."""
    t = min(preferred, dim)
    t = max(128, (t // 128) * 128)
    while dim % t != 0:
        t -= 128
    return t


def _choose_dim_tiling(dim: int, target: int) -> tuple:
    """Return (padded_dim, tile); tile is a multiple of 128 dividing padded_dim.

    Prefers not to grow an already-128-aligned dim (avoids an extra HBM pad
    copy of large operands such as the NxN adjacency).  If the only available
    divisor would collapse below 256, the dim is padded up to the target tile
    instead: a 128-wide tile costs far more (pipelining / MXU fill) than a
    little extra zero-padding.
    """
    d128 = _round_up(dim, 128)
    target = max(128, (target // 128) * 128)
    if d128 <= target:
        return d128, d128
    if d128 == dim:
        t = _pick_tile(dim, target)
        if t >= 256:
            return dim, t
    return _round_up(dim, target), target


def _vmem_budget_bytes() -> int:
    """Per-generation VMEM budget used for tile planning."""
    try:
        kind = jax.devices()[0].device_kind.lower()
    except Exception:  # pragma: no cover - defensive
        kind = ""
    # v5e / v5p / v6e expose 128 MiB of VMEM -> use most of it (bigger blocks
    # amortize the ~0.35 us per-grid-step overhead).  Anything else (v7x has
    # only 64 MiB per TensorCore; older / unknown chips vary) stays
    # conservative.
    if ("v5" in kind) or ("v6" in kind):
        return 100 << 20
    return 40 << 20


def _plan_tiles(N: int, F_in: int, F_out: int, budget: int):
    """Choose padded dims + tiles so the working set fits the VMEM budget."""
    F_in_p = _round_up(F_in, 128)
    # TODO(synk): tile the F_in contraction (inner manual-DMA loop) so very
    # wide inputs (F_in >~ 8K) do not force tk / tn to shrink to fit VMEM.
    row_target = 1024 if budget >= (96 << 20) else 512
    out_target = _round_up(F_out, 128)  # full F_out -> adjacency streamed once

    def layout(row_t, out_t):
        N_p, trow = _choose_dim_tiling(N, row_t)
        F_out_p, tn = _choose_dim_tiling(F_out, out_t)
        vmem = (
            2 * trow * trow * 2      # adj tiles   (bf16, double-buffered)
            + 2 * trow * F_in_p * 2  # x tiles     (bf16, double-buffered)
            + 2 * F_in_p * tn * 2    # weight tile (bf16, double-buffered)
            + 2 * trow * tn * 4      # f32 resident output block
            + N_p * tn * 2           # support slab scratch (bf16)
        )
        return N_p, trow, F_out_p, tn, vmem

    fit = int(budget * 0.75)  # headroom for compiler-internal scratch
    plan = layout(row_target, out_target)
    # Shrinking the row tile only adds per-step overhead (no extra HBM
    # traffic); shrinking tn re-streams the N^2 adjacency once per extra
    # j block, so it is the last thing we give up.
    while plan[-1] > fit and row_target > 256:
        row_target //= 2
        plan = layout(row_target, out_target)
    while plan[-1] > fit and out_target > 128:
        out_target = _round_up(out_target // 2, 128)
        plan = layout(row_target, out_target)
    N_p, trow, F_out_p, tn, _ = plan
    return N_p, F_in_p, F_out_p, trow, tn


def _gcn_fused_kernel(adj_ref, x_ref, w_ref, o_ref, support_ref):
    # Grid = (j over F_out tiles, i over output-row tiles, k over adj columns).
    i = pl.program_id(1)
    k = pl.program_id(2)

    # Zero the resident f32 output block at the start of the k reduction.
    @pl.when(k == 0)
    def _():
        o_ref[...] = jnp.zeros_like(o_ref)

    # Build the support slab for this j column tile exactly once (i == 0):
    #   support[k] = x[k_tile, :] @ W[:, j_tile]
    # f32 MXU accumulation, stored bf16 so the second matmul stays on the fast
    # bf16 MXU path (documented double rounding).
    @pl.when(i == 0)
    def _():
        support_ref[k] = jnp.dot(
            x_ref[...], w_ref[...], preferred_element_type=jnp.float32
        ).astype(support_ref.dtype)

    # Accumulate adj[i_tile, k_tile] @ support[k] into the resident block.
    o_ref[...] += jnp.dot(
        adj_ref[...], support_ref[k], preferred_element_type=jnp.float32
    )


@functools.partial(jax.jit, static_argnames=("row_tile", "out_tile"))
def gcn_forward(x, adj, weight, *, row_tile=None, out_tile=None):
    """output = adj @ (x @ weight), fused in one Pallas TPU kernel.

    x      : [N, F_in]    node features
    adj    : [N, N]       dense (normalized) adjacency (spmm treated as dense)
    weight : [F_in, F_out]
    returns: [N, F_out]   float32

    row_tile / out_tile override the automatic tile planning (testing only).
    """
    N, F_in = x.shape
    F_in_w, F_out = weight.shape
    assert F_in == F_in_w, f"feature mismatch: {F_in} vs {F_in_w}"
    assert adj.shape == (N, N), f"adj must be [N, N], got {adj.shape}"

    budget = _vmem_budget_bytes()
    if row_tile is None and out_tile is None:
        N_p, F_in_p, F_out_p, tm, tn = _plan_tiles(N, F_in, F_out, budget)
    else:
        F_in_p = _round_up(F_in, 128)
        N_p, tm = _choose_dim_tiling(N, row_tile or 512)
        F_out_p, tn = _choose_dim_tiling(
            F_out, out_tile or _round_up(F_out, 128)
        )
    tk = tm  # row and contraction tiles both tile the padded N

    # bf16 MXU operands (cast fuses with the pad where a pad is needed);
    # accumulation stays f32 inside the kernel.
    x_b = x.astype(jnp.bfloat16)
    adj_b = adj.astype(jnp.bfloat16)
    w_b = weight.astype(jnp.bfloat16)
    if N_p != N or F_in_p != F_in:
        x_b = jnp.pad(x_b, ((0, N_p - N), (0, F_in_p - F_in)))
    if N_p != N:
        # Only non-aligned (or awkwardly factored) N pays for this adjacency
        # pad copy; 128-aligned N with a clean divisor goes straight through.
        adj_b = jnp.pad(adj_b, ((0, N_p - N), (0, N_p - N)))
    if F_in_p != F_in or F_out_p != F_out:
        w_b = jnp.pad(w_b, ((0, F_in_p - F_in), (0, F_out_p - F_out)))

    grid = (F_out_p // tn, N_p // tm, N_p // tk)  # (j, i, k)

    out = pl.pallas_call(
        _gcn_fused_kernel,
        out_shape=jax.ShapeDtypeStruct((N_p, F_out_p), jnp.float32),
        grid_spec=pltpu.PrefetchScalarGridSpec(
            num_scalar_prefetch=0,
            grid=grid,
            in_specs=[
                # adjacency tile: streamed over (i, k); with tn == F_out_p
                # there is a single j block and adj is read exactly once.
                pl.BlockSpec((tm, tk), lambda j, i, k: (i, k)),
                # x tile: only needed while building the support slab
                # (i == 0); freeze the block index afterwards so Pallas does
                # not re-stream x tiles the kernel will not read.
                pl.BlockSpec(
                    (tk, F_in_p),
                    lambda j, i, k: (jnp.where(i == 0, k, 0), 0),
                ),
                # weight column tile: resident in VMEM for the whole (i, k)
                # sweep of each j.
                pl.BlockSpec((F_in_p, tn), lambda j, i, k: (0, j)),
            ],
            out_specs=pl.BlockSpec((tm, tn), lambda j, i, k: (i, j)),
            scratch_shapes=[
                # Support slab for the current j: (N_p / tk) tiles of (tk, tn).
                pltpu.VMEM((N_p // tk, tk, tn), jnp.bfloat16),
            ],
        ),
        compiler_params=pltpu.CompilerParams(
            # i must stay sequential: i > 0 consumes the (per-core) slab built
            # at i == 0.  j is safe to split across TensorCores.
            dimension_semantics=("parallel", "arbitrary", "arbitrary"),
            vmem_limit_bytes=budget,
        ),
    )(adj_b, x_b, w_b)

    return out[:N, :F_out]


class GraphConvolution:
    """JAX/Pallas port of the PyTorch GraphConvolution module (no bias)."""

    def __init__(self, in_features: int, out_features: int, key=None):
        self.in_features = in_features
        self.out_features = out_features
        if key is None:
            key = jax.random.PRNGKey(42)
        # reset_parameters(): weight.data.normal_(0, 1)  (matches the spec's
        # init distribution; exact torch RNG bit-parity is not reproducible).
        self.weight = jax.random.normal(
            key, (in_features, out_features), dtype=jnp.float32
        )

    def __call__(self, x: jax.Array, adj: jax.Array, **tile_overrides):
        # TODO(synk): add a block-sparse adjacency path (scalar-prefetched
        # nonzero column-block indices via PrefetchScalarGridSpec) for graphs
        # where adj is genuinely sparse; torch.spmm is treated as dense here.
        return gcn_forward(x, adj, self.weight, **tile_overrides)

    def __repr__(self):
        return f"GraphConvolution ({self.in_features} -> {self.out_features})"


def _make_inputs(key, n_nodes, f_in):
    kx, kadj = jax.random.split(key, 2)
    x = jax.random.normal(kx, (n_nodes, f_in), dtype=jnp.float32)
    # Symmetric, row-normalized dense adjacency (what spmm would multiply by).
    a = (jax.random.uniform(kadj, (n_nodes, n_nodes)) < 0.1).astype(jnp.float32)
    a = jnp.clip(a + a.T + jnp.eye(n_nodes, dtype=jnp.float32), 0.0, 1.0)
    adj = a / jnp.sum(a, axis=1, keepdims=True)
    return x, adj


def _check(out, x, adj, weight, tag):
    ref = adj @ (x @ weight)
    max_err = float(jnp.max(jnp.abs(out - ref)))
    assert jnp.allclose(out, ref, atol=0.15, rtol=0.05), (
        f"{tag}: mismatch vs reference, max abs err {max_err:.4f}"
    )


if __name__ == "__main__":
    key = jax.random.PRNGKey(0)
    k1, k2, kw1, kw2 = jax.random.split(key, 4)

    # --- Test 1: small aligned shapes, automatic tiling (single-block path).
    N1, FI1, FO1 = 256, 128, 128
    x1, adj1 = _make_inputs(k1, N1, FI1)
    layer1 = GraphConvolution(FI1, FO1, key=kw1)
    out1 = jax.block_until_ready(layer1(x1, adj1))
    assert out1.shape == (N1, FO1) and out1.dtype == jnp.float32
    _check(out1, x1, adj1, layer1.weight, "test1")

    # --- Test 2: forced small tiles -> multi-block i/j/k grid, exercises the
    # support-slab reuse across i, the parallel j axis, and F_out padding.
    N2, FI2, FO2 = 384, 256, 192
    x2, adj2 = _make_inputs(k2, N2, FI2)
    layer2 = GraphConvolution(FI2, FO2, key=kw2)
    out2 = jax.block_until_ready(layer2(x2, adj2, row_tile=128, out_tile=128))
    assert out2.shape == (N2, FO2) and out2.dtype == jnp.float32
    _check(out2, x2, adj2, layer2.weight, "test2")

    print("KERNEL_OK")
</pallas_src>

<mosaic_0001>
module attributes {stable_mosaic.version = 11 : i64} {
  func.func @_gcn_fused_kernel(%arg0: i32, %arg1: i32, %arg2: i32, %arg3: memref<256x256xbf16, #tpu.memory_space<vmem>>, %arg4: memref<256x128xbf16, #tpu.memory_space<vmem>>, %arg5: memref<128x128xbf16, #tpu.memory_space<vmem>>, %arg6: memref<256x128xf32, #tpu.memory_space<vmem>>, %arg7: memref<1x256x128xbf16, #tpu.memory_space<vmem>>) attributes {dimension_semantics = [#tpu.dimension_semantics<parallel>, #tpu.dimension_semantics<arbitrary>, #tpu.dimension_semantics<arbitrary>], iteration_bounds = array<i64: 1, 1, 1>, scalar_prefetch = 0 : i64, scratch_operands = 1 : i64, tpu.core_type = #tpu.core_type<tc>, window_params = [{transform_indices = @transform_0, window_bounds = array<i64: 256, 256>}, {transform_indices = @transform_1, window_bounds = array<i64: 256, 128>}, {transform_indices = @transform_2, window_bounds = array<i64: 128, 128>}, {transform_indices = @transform_3, window_bounds = array<i64: 256, 128>}]} {
    %c0_i32 = arith.constant 0 : i32
    %0 = arith.cmpi eq, %arg2, %c0_i32 : i32
    %1 = arith.extui %0 : i1 to i32
    %c0_i32_0 = arith.constant 0 : i32
    %2 = arith.cmpi ne, %1, %c0_i32_0 : i32
    scf.if %2 {
      %cst_10 = arith.constant 0.000000e+00 : f32
      %14 = vector.broadcast %cst_10 : f32 to vector<256x128xf32>
      %c0_11 = arith.constant 0 : index
      %c0_12 = arith.constant 0 : index
      %15 = vector.load %arg6[%c0_11, %c0_12] : memref<256x128xf32, #tpu.memory_space<vmem>>, vector<256x128xf32>
      tpu.vector_store %arg6[%c0_11, %c0_12], %14 {strides = array<i32>} : memref<256x128xf32, #tpu.memory_space<vmem>>, vector<256x128xf32>,
    } else {
    }
    %c0_i32_1 = arith.constant 0 : i32
    %3 = arith.cmpi eq, %arg1, %c0_i32_1 : i32
    %4 = arith.extui %3 : i1 to i32
    %c0_i32_2 = arith.constant 0 : i32
    %5 = arith.cmpi ne, %4, %c0_i32_2 : i32
    scf.if %5 {
      %c0_10 = arith.constant 0 : index
      %c0_11 = arith.constant 0 : index
      %14 = vector.load %arg4[%c0_10, %c0_11] : memref<256x128xbf16, #tpu.memory_space<vmem>>, vector<256x128xbf16>
      %c0_12 = arith.constant 0 : index
      %c0_13 = arith.constant 0 : index
      %15 = vector.load %arg5[%c0_12, %c0_13] : memref<128x128xbf16, #tpu.memory_space<vmem>>, vector<128x128xbf16>
      %cst_14 = arith.constant dense<0.000000e+00> : vector<256x128xf32>
      %16 = tpu.matmul %14, %15, %cst_14 {dimension_numbers = #tpu.dot_dimension_numbers<[1], [0], [0], [1], [0, 0, 1, 1], [], []>} : vector<256x128xbf16>, vector<128x128xbf16>, vector<256x128xf32> -> vector<256x128xf32>
      %17 = arith.truncf %16 : vector<256x128xf32> to vector<256x128xbf16>
      %18 = arith.index_cast %arg2 : i32 to index
      %c0_15 = arith.constant 0 : index
      %c0_16 = arith.constant 0 : index
      %19 = vector.load %arg7[%18, %c0_15, %c0_16] : memref<1x256x128xbf16, #tpu.memory_space<vmem>>, vector<1x256x128xbf16>
      %20 = vector.shape_cast %19 : vector<1x256x128xbf16> to vector<256x128xbf16>
      %21 = vector.shape_cast %17 : vector<256x128xbf16> to vector<1x256x128xbf16>
      tpu.vector_store %arg7[%18, %c0_15, %c0_16], %21 {strides = array<i32>} : memref<1x256x128xbf16, #tpu.memory_space<vmem>>, vector<1x256x128xbf16>,
    } else {
    }
    %c0 = arith.constant 0 : index
    %c0_3 = arith.constant 0 : index
    %6 = vector.load %arg6[%c0, %c0_3] : memref<256x128xf32, #tpu.memory_space<vmem>>, vector<256x128xf32>
    %c0_4 = arith.constant 0 : index
    %c0_5 = arith.constant 0 : index
    %7 = vector.load %arg3[%c0_4, %c0_5] : memref<256x256xbf16, #tpu.memory_space<vmem>>, vector<256x256xbf16>
    %8 = arith.index_cast %arg2 : i32 to index
    %c0_6 = arith.constant 0 : index
    %c0_7 = arith.constant 0 : index
    %9 = vector.load %arg7[%8, %c0_6, %c0_7] : memref<1x256x128xbf16, #tpu.memory_space<vmem>>, vector<1x256x128xbf16>
    %10 = vector.shape_cast %9 : vector<1x256x128xbf16> to vector<256x128xbf16>
    %cst = arith.constant dense<0.000000e+00> : vector<256x128xf32>
    %11 = tpu.matmul %7, %10, %cst {dimension_numbers = #tpu.dot_dimension_numbers<[1], [0], [0], [1], [0, 0, 1, 1], [], []>} : vector<256x256xbf16>, vector<256x128xbf16>, vector<256x128xf32> -> vector<256x128xf32>
    %12 = arith.addf %6, %11 : vector<256x128xf32>
    %c0_8 = arith.constant 0 : index
    %c0_9 = arith.constant 0 : index
    %13 = vector.load %arg6[%c0_8, %c0_9] : memref<256x128xf32, #tpu.memory_space<vmem>>, vector<256x128xf32>
    tpu.vector_store %arg6[%c0_8, %c0_9], %12 {strides = array<i32>} : memref<256x128xf32, #tpu.memory_space<vmem>>, vector<256x128xf32>,
    return
  }
  func.func @transform_0(%arg0: i32, %arg1: i32, %arg2: i32) -> (i32, i32) {
    %c0_i32 = arith.constant 0 : i32
    return %arg1, %arg2 : i32, i32
  }
  func.func @transform_1(%arg0: i32, %arg1: i32, %arg2: i32) -> (i32, i32) {
    %c0_i32 = arith.constant 0 : i32
    %0 = arith.cmpi eq, %arg1, %c0_i32 : i32
    %c0_i32_0 = arith.constant 0 : i32
    %1 = arith.select %0, %arg2, %c0_i32_0 : i32
    %c0_i32_1 = arith.constant 0 : i32
    %c0_i32_2 = arith.constant 0 : i32
    return %1, %c0_i32_1 : i32, i32
  }
  func.func @transform_2(%arg0: i32, %arg1: i32, %arg2: i32) -> (i32, i32) {
    %c0_i32 = arith.constant 0 : i32
    %c0_i32_0 = arith.constant 0 : i32
    return %c0_i32, %arg0 : i32, i32
  }
  func.func @transform_3(%arg0: i32, %arg1: i32, %arg2: i32) -> (i32, i32) {
    %c0_i32 = arith.constant 0 : i32
    return %arg1, %arg0 : i32, i32
  }
}

</mosaic_0001>

<llo_original>
// kernel: gcn_forward.1
$region0: #{gcn_forward.1}
  #allocation0 [shape = 'u32[]', space=smem, size = 0x4, offset = 0x4, fixed_abs, tag = 'smem constant byte address 0x4 - core index']
  #allocation1 [shape = 'u32[144,128]{1,0:T(1,128)}', space=vmem, size = 0x12000, scoped, tag = 'internal scratch']
  #allocation2 [shape = 'bf16[1,256,128]{2,1,0:T(8,128)(2,1)}', space=vmem, size = 0x10000, scoped, tag = 'scratch operand']
  %s0 = inlined_call_operand.vmem [shape: bf16[256,256], index: 0, kind: input, shape index: {}]
  %s1 = inlined_call_operand.vmem [shape: bf16[256,128], index: 1, kind: input, shape index: {}]
  %s2 = inlined_call_operand.vmem [shape: bf16[128,128], index: 2, kind: input, shape index: {}]
  %s3 = inlined_call_operand.hbm [shape: f32[256,128], index: 3, kind: output, shape index: {}]
  %s4 = sld [smem:[#allocation0]]
  $region30: #{gcn_forward.1} parent=0
    _
  %s6 = ssub.s32 1, %s4
  %s7 = scalar_select 0, %s6, %s4
  $region1: #{gcn_forward.1} parent=0
    #allocation3 [shape = 'u8[131072]{0}', space=vmem, size = 0x20000, scoped, tag = 'output window, operand 0, single buffered']
    #allocation4 [shape = 's32[1]{0}', space=sflag, size = 0x4, scoped, tag = 'scoped memory for gcn_forward.1']
    %8 = vsyncpa [#allocation4], 0
    // Predicated region
    $region2: #{gcn_forward.1} parent=1 // pred_check
      _
    $region3: #{gcn_forward.1} parent=1 // pred_check_branch
      %10 = sbr.rel (0) target = $region5
    $region4: #{gcn_forward.1} parent=1 // pred_region
      _
    $region5: #{gcn_forward.1} parent=1 // pred_fallthru
      _
    // Predicated region
    $region6: #{gcn_forward.1} parent=1 // pred_check
      _
    $region7: #{gcn_forward.1} parent=1 // pred_check_branch
      %12 = sbr.rel (0) target = $region9
    $region8: #{gcn_forward.1} parent=1 // pred_region
      %p13 = scmp.eq.s32.totalorder 0, 0
      %s14 = scalar_select %p13, 0, 0
      %s15 = smul.u32 32, %s14
      %p16 = scmp.lt.s32.totalorder %s15, 31
      %s17 = scalar_select %p16, %s15, 31
      %s18 = smul.addr %s17, 4
      %s19 = scalar_lea.vmem %s1, %s18
      %p20 = scmp.eq.s32.totalorder 0, 0
      %s21 = scalar_select %p20, 0, 0
      %s22 = smul.u32 32, %s21
    $region9: #{gcn_forward.1} parent=1 // pred_fallthru
      _
    // Predicated region
    $region10: #{gcn_forward.1} parent=1 // pred_check
      _
    $region11: #{gcn_forward.1} parent=1 // pred_check_branch
      %24 = sbr.rel (0) target = $region13
    $region12: #{gcn_forward.1} parent=1 // pred_region
      _
    $region13: #{gcn_forward.1} parent=1 // pred_fallthru
      _
    %p25 = scmp.eq.s32.totalorder 0, 0
    %s26 = scalar_select %p25, 0, 0
    %s27 = smul.u32 32, %s26
    %p28 = scmp.lt.s32.totalorder %s27, 31
    %s29 = scalar_select %p28, %s27, 31
    %s30 = smul.addr %s29, 4
    %s31 = scalar_lea.vmem %s1, %s30
    %p32 = scmp.eq.s32.totalorder 0, 0
    %s33 = scalar_select %p32, 0, 0
    %s34 = smul.u32 32, %s33
    %p35 = scmp.lt.s32.totalorder %s34, 31
    %s36 = scalar_select %p35, %s34, 31
    %s37 = smul.addr %s36, 4
    %s38 = scalar_lea.vmem %s1, %s37
    %p39 = scmp.eq.s32.totalorder 0, 0
    %s40 = scalar_select %p39, 0, 0
    %s41 = smul.u32 32, %s40
    %p43 = scmp.eq.s32.totalorder 0, 0
    // Predicated region
    $region14: #{gcn_forward.1} parent=1 // pred_check
      %p44 = pneg %p43
    $region15: #{gcn_forward.1} parent=1 // pred_check_branch
      %46 = sbr.rel (%p44) target = $region17
    $region16: #{gcn_forward.1} parent=1 // pred_region
      %47 = vst [vmem:[#allocation3] sm:$0xff] 0.0
      %48 = vst [vmem:[#allocation3 + $0x8] sm:$0xff] 0.0
      %49 = vst [vmem:[#allocation3 + $0x10] sm:$0xff] 0.0
      %50 = vst [vmem:[#allocation3 + $0x18] sm:$0xff] 0.0
      %51 = vst [vmem:[#allocation3 + $0x20] sm:$0xff] 0.0
      %52 = vst [vmem:[#allocation3 + $0x28] sm:$0xff] 0.0
      %53 = vst [vmem:[#allocation3 + $0x30] sm:$0xff] 0.0
      %54 = vst [vmem:[#allocation3 + $0x38] sm:$0xff] 0.0
      %55 = vst [vmem:[#allocation3 + $0x40] sm:$0xff] 0.0
      %56 = vst [vmem:[#allocation3 + $0x48] sm:$0xff] 0.0
      %57 = vst [vmem:[#allocation3 + $0x50] sm:$0xff] 0.0
      %58 = vst [vmem:[#allocation3 + $0x58] sm:$0xff] 0.0
      %59 = vst [vmem:[#allocation3 + $0x60] sm:$0xff] 0.0
      %60 = vst [vmem:[#allocation3 + $0x68] sm:$0xff] 0.0
      %61 = vst [vmem:[#allocation3 + $0x70] sm:$0xff] 0.0
      %62 = vst [vmem:[#allocation3 + $0x78] sm:$0xff] 0.0
      %63 = vst [vmem:[#allocation3 + $0x80] sm:$0xff] 0.0
      %64 = vst [vmem:[#allocation3 + $0x88] sm:$0xff] 0.0
      %65 = vst [vmem:[#allocation3 + $0x90] sm:$0xff] 0.0
      %66 = vst [vmem:[#allocation3 + $0x98] sm:$0xff] 0.0
      %67 = vst [vmem:[#allocation3 + $0xa0] sm:$0xff] 0.0
      %68 = vst [vmem:[#allocation3 + $0xa8] sm:$0xff] 0.0
      %69 = vst [vmem:[#allocation3 + $0xb0] sm:$0xff] 0.0
      %70 = vst [vmem:[#allocation3 + $0xb8] sm:$0xff] 0.0
      %71 = vst [vmem:[#allocation3 + $0xc0] sm:$0xff] 0.0
      %72 = vst [vmem:[#allocation3 + $0xc8] sm:$0xff] 0.0
      %73 = vst [vmem:[#allocation3 + $0xd0] sm:$0xff] 0.0
      %74 = vst [vmem:[#allocation3 + $0xd8] sm:$0xff] 0.0
      %75 = vst [vmem:[#allocation3 + $0xe0] sm:$0xff] 0.0
      %76 = vst [vmem:[#allocation3 + $0xe8] sm:$0xff] 0.0
      %77 = vst [vmem:[#allocation3 + $0xf0] sm:$0xff] 0.0
      %78 = vst [vmem:[#allocation3 + $0xf8] sm:$0xff] 0.0
    $region17: #{gcn_forward.1} parent=1 // pred_fallthru
      _
    %p79 = scmp.eq.s32.totalorder 0, 0
    // Predicated region
    $region18: #{gcn_forward.1} parent=1 // pred_check
      %p80 = pneg %p79
    $region19: #{gcn_forward.1} parent=1 // pred_check_branch
      %82 = sbr.rel (%p80) target = $region21
    $region20: #{gcn_forward.1} parent=1 // pred_region
      %v83 = vld [vmem:[%s38] sm:$0xf]
      %v84 = vld [vmem:[%s38 + $0x4] sm:$0xf]
      %v85 = vld [vmem:[%s38 + $0x8] sm:$0xf]
      %v86 = vld [vmem:[%s38 + $0xc] sm:$0xf]
      %v87 = vld [vmem:[%s38 + $0x10] sm:$0xf]
      %v88 = vld [vmem:[%s38 + $0x14] sm:$0xf]
      %v89 = vld [vmem:[%s38 + $0x18] sm:$0xf]
      %v90 = vld [vmem:[%s38 + $0x1c] sm:$0xf]
      %v91 = vld [vmem:[%s38 + $0x20] sm:$0xf]
      %v92 = vld [vmem:[%s38 + $0x24] sm:$0xf]
      %v93 = vld [vmem:[%s38 + $0x28] sm:$0xf]
      %v94 = vld [vmem:[%s38 + $0x2c] sm:$0xf]
      %v95 = vld [vmem:[%s38 + $0x30] sm:$0xf]
      %v96 = vld [vmem:[%s38 + $0x34] sm:$0xf]
      %v97 = vld [vmem:[%s38 + $0x38] sm:$0xf]
      %v98 = vld [vmem:[%s38 + $0x3c] sm:$0xf]
      %v99 = vld [vmem:[%s38 + $0x40] sm:$0xf]
      %v100 = vld [vmem:[%s38 + $0x44] sm:$0xf]
      %v101 = vld [vmem:[%s38 + $0x48] sm:$0xf]
      %v102 = vld [vmem:[%s38 + $0x4c] sm:$0xf]
      %v103 = vld [vmem:[%s38 + $0x50] sm:$0xf]
      %v104 = vld [vmem:[%s38 + $0x54] sm:$0xf]
      %v105 = vld [vmem:[%s38 + $0x58] sm:$0xf]
      %v106 = vld [vmem:[%s38 + $0x5c] sm:$0xf]
      %v107 = vld [vmem:[%s38 + $0x60] sm:$0xf]
      %v108 = vld [vmem:[%s38 + $0x64] sm:$0xf]
      %v109 = vld [vmem:[%s38 + $0x68] sm:$0xf]
      %v110 = vld [vmem:[%s38 + $0x6c] sm:$0xf]
      %v111 = vld [vmem:[%s38 + $0x70] sm:$0xf]
      %v112 = vld [vmem:[%s38 + $0x74] sm:$0xf]
      %v113 = vld [vmem:[%s38 + $0x78] sm:$0xf]
      %v114 = vld [vmem:[%s38 + $0x7c] sm:$0xf]
      %v115 = vld [vmem:[%s2] sm:$0xf]
      %v116 = vld [vmem:[%s2 + $0x4] sm:$0xf]
      %v117 = vld [vmem:[%s2 + $0x8] sm:$0xf]
      %v118 = vld [vmem:[%s2 + $0xc] sm:$0xf]
      %v119 = vld [vmem:[%s2 + $0x10] sm:$0xf]
      %v120 = vld [vmem:[%s2 + $0x14] sm:$0xf]
      %v121 = vld [vmem:[%s2 + $0x18] sm:$0xf]
      %v122 = vld [vmem:[%s2 + $0x1c] sm:$0xf]
      %v123 = vld [vmem:[%s2 + $0x20] sm:$0xf]
      %v124 = vld [vmem:[%s2 + $0x24] sm:$0xf]
      %v125 = vld [vmem:[%s2 + $0x28] sm:$0xf]
      %v126 = vld [vmem:[%s2 + $0x2c] sm:$0xf]
      %v127 = vld [vmem:[%s2 + $0x30] sm:$0xf]
      %v128 = vld [vmem:[%s2 + $0x34] sm:$0xf]
      %v129 = vld [vmem:[%s2 + $0x38] sm:$0xf]
      %v130 = vld [vmem:[%s2 + $0x3c] sm:$0xf]
      %v163 = vunpack.c.l.b16 %v83
      %v164 = vunpack.c.l.b16 %v84
      %v165 = vunpack.c.l.b16 %v85
      %v166 = vunpack.c.l.b16 %v86
      %v167 = vunpack.c.l.b16 %v87
      %v168 = vunpack.c.l.b16 %v88
      %v169 = vunpack.c.l.b16 %v89
      %v170 = vunpack.c.l.b16 %v90
      %v171 = vunpack.c.l.b16 %v91
      %v172 = vunpack.c.l.b16 %v92
      %v173 = vunpack.c.l.b16 %v93
      %v174 = vunpack.c.l.b16 %v94
      %v175 = vunpack.c.l.b16 %v95
      %v176 = vunpack.c.l.b16 %v96
      %v177 = vunpack.c.l.b16 %v97
      %v178 = vunpack.c.l.b16 %v98
      %v179 = vunpack.c.l.b16 %v99
      %v180 = vunpack.c.l.b16 %v100
      %v181 = vunpack.c.l.b16 %v101
      %v182 = vunpack.c.l.b16 %v102
      %v183 = vunpack.c.l.b16 %v103
      %v184 = vunpack.c.l.b16 %v104
      %v185 = vunpack.c.l.b16 %v105
      %v186 = vunpack.c.l.b16 %v106
      %v187 = vunpack.c.l.b16 %v107
      %v188 = vunpack.c.l.b16 %v108
      %v189 = vunpack.c.l.b16 %v109
      %v190 = vunpack.c.l.b16 %v110
      %v191 = vunpack.c.l.b16 %v111
      %v192 = vunpack.c.l.b16 %v112
      %v193 = vunpack.c.l.b16 %v113
      %v194 = vunpack.c.l.b16 %v114
      %v195 = vpack.c.b16 %v164, %v163
      %v196 = vpack.c.b16 %v166, %v165
      %v197 = vpack.c.b16 %v168, %v167
      %v198 = vpack.c.b16 %v170, %v169
      %v199 = vpack.c.b16 %v172, %v171
      %v200 = vpack.c.b16 %v174, %v173
      %v201 = vpack.c.b16 %v176, %v175
      %v202 = vpack.c.b16 %v178, %v177
      %v203 = vpack.c.b16 %v180, %v179
      %v204 = vpack.c.b16 %v182, %v181
      %v205 = vpack.c.b16 %v184, %v183
      %v206 = vpack.c.b16 %v186, %v185
      %v207 = vpack.c.b16 %v188, %v187
      %v208 = vpack.c.b16 %v190, %v189
      %v209 = vpack.c.b16 %v192, %v191
      %v210 = vpack.c.b16 %v194, %v193
      %v243 = vunpack.c.l.b16 %v115
      %v244 = vunpack.c.l.b16 %v116
      %v245 = vunpack.c.l.b16 %v117
      %v246 = vunpack.c.l.b16 %v118
      %v247 = vunpack.c.l.b16 %v119
      %v248 = vunpack.c.l.b16 %v120
      %v249 = vunpack.c.l.b16 %v121
      %v250 = vunpack.c.l.b16 %v122
      %v251 = vunpack.c.l.b16 %v123
      %v252 = vunpack.c.l.b16 %v124
      %v253 = vunpack.c.l.b16 %v125
      %v254 = vunpack.c.l.b16 %v126
      %v255 = vunpack.c.l.b16 %v127
      %v256 = vunpack.c.l.b16 %v128
      %v257 = vunpack.c.l.b16 %v129
      %v258 = vunpack.c.l.b16 %v130
      %v259 = vpack.c.b16 %v244, %v243
      %v260 = vpack.c.b16 %v246, %v245
      %v261 = vpack.c.b16 %v248, %v247
      %v262 = vpack.c.b16 %v250, %v249
      %v263 = vpack.c.b16 %v252, %v251
      %v264 = vpack.c.b16 %v254, %v253
      %v265 = vpack.c.b16 %v256, %v255
      %v266 = vpack.c.b16 %v258, %v257
      %275 = vmatprep.subr.bf16.mxu0 0
      %276 = vmatpush1.bf16.msra.mxu0 %v266
      %277 = vmatprep.subr.bf16.mxu0 0
      %278 = vmatpush1.bf16.msra.mxu0 %v265
      %279 = vmatprep.subr.bf16.mxu0 0
      %280 = vmatpush1.bf16.msra.mxu0 %v264
      %281 = vmatprep.subr.bf16.mxu0 0
      %282 = vmatpush1.bf16.msra.mxu0 %v263
      %283 = vmatprep.subr.bf16.mxu0 0
      %284 = vmatpush1.bf16.msra.mxu0 %v262
      %285 = vmatprep.subr.bf16.mxu0 0
      %286 = vmatpush1.bf16.msra.mxu0 %v261
      %287 = vmatprep.subr.bf16.mxu0 0
      %288 = vmatpush1.bf16.msra.mxu0 %v260
      %289 = vmatprep.subr.bf16.mxu0 0
      %290 = vmatpush1.bf16.msra.mxu0 %v259
      %291 = vmatprep.subr.bf16.mxu0 0
      %292 = vmatpush2.bf16.msra.mxu0 0
      %293 = vmatprep.subr.bf16.mxu0 0
      %294 = vmatpush2.bf16.msra.mxu0 0
      %295 = vmatprep.subr.bf16.mxu0 0
      %296 = vmatpush2.bf16.msra.mxu0 0
      %297 = vmatprep.subr.bf16.mxu0 0
      %298 = vmatpush2.bf16.msra.mxu0 0
      %299 = vmatprep.subr.bf16.mxu0 0
      %300 = vmatpush2.bf16.msra.mxu0 0
      %301 = vmatprep.subr.bf16.mxu0 0
      %302 = vmatpush2.bf16.msra.mxu0 0
      %303 = vmatprep.subr.bf16.mxu0 0
      %304 = vmatpush2.bf16.msra.mxu0 0
      %305 = vmatprep.subr.bf16.mxu0 0
      %306 = vmatpush2.bf16.msra.mxu0 0
      %307 = vmatprep.mubr.bf16.mxu0 0
      %308 = vmatmul.mubr.bf16.gmra.mxu0 %v195
      %v309 = vpop.f32.mrf.mxu0
      %v310 = vadd.f32 0.0, %v309
      %v311 = vpop.f32.mrf.mxu0
      %v312 = vpop.f32.mrf.mxu0
      %v313 = vadd.f32 0.0, %v312
      %v314 = vpop.f32.mrf.mxu0
      %315 = vmatprep.mubr.bf16.mxu0 0
      %316 = vmatmul.mubr.bf16.gmra.mxu0 %v196
      %v317 = vpop.f32.mrf.mxu0
      %v318 = vadd.f32 0.0, %v317
      %v319 = vpop.f32.mrf.mxu0
      %v320 = vpop.f32.mrf.mxu0
      %v321 = vadd.f32 0.0, %v320
      %v322 = vpop.f32.mrf.mxu0
      %323 = vmatprep.mubr.bf16.mxu0 0
      %324 = vmatmul.mubr.bf16.gmra.mxu0 %v197
      %v325 = vpop.f32.mrf.mxu0
      %v326 = vadd.f32 0.0, %v325
      %v327 = vpop.f32.mrf.mxu0
      %v328 = vpop.f32.mrf.mxu0
      %v329 = vadd.f32 0.0, %v328
      %v330 = vpop.f32.mrf.mxu0
      %331 = vmatprep.mubr.bf16.mxu0 0
      %332 = vmatmul.mubr.bf16.gmra.mxu0 %v198
      %v333 = vpop.f32.mrf.mxu0
      %v334 = vadd.f32 0.0, %v333
      %v335 = vpop.f32.mrf.mxu0
      %v336 = vpop.f32.mrf.mxu0
      %v337 = vadd.f32 0.0, %v336
      %v338 = vpop.f32.mrf.mxu0
      %339 = vmatprep.mubr.bf16.mxu0 0
      %340 = vmatmul.mubr.bf16.gmra.mxu0 %v199
      %v341 = vpop.f32.mrf.mxu0
      %v342 = vadd.f32 0.0, %v341
      %v343 = vpop.f32.mrf.mxu0
      %v344 = vpop.f32.mrf.mxu0
      %v345 = vadd.f32 0.0, %v344
      %v346 = vpop.f32.mrf.mxu0
      %347 = vmatprep.mubr.bf16.mxu0 0
      %348 = vmatmul.mubr.bf16.gmra.mxu0 %v200
      %v349 = vpop.f32.mrf.mxu0
      %v350 = vadd.f32 0.0, %v349
      %v351 = vpop.f32.mrf.mxu0
      %v352 = vpop.f32.mrf.mxu0
      %v353 = vadd.f32 0.0, %v352
      %v354 = vpop.f32.mrf.mxu0
      %355 = vmatprep.mubr.bf16.mxu0 0
      %356 = vmatmul.mubr.bf16.gmra.mxu0 %v201
      %v357 = vpop.f32.mrf.mxu0
      %v358 = vadd.f32 0.0, %v357
      %v359 = vpop.f32.mrf.mxu0
      %v360 = vpop.f32.mrf.mxu0
      %v361 = vadd.f32 0.0, %v360
      %v362 = vpop.f32.mrf.mxu0
      %363 = vmatprep.mubr.bf16.mxu0 0
      %364 = vmatmul.mubr.bf16.gmra.mxu0 %v202
      %v365 = vpop.f32.mrf.mxu0
      %v366 = vadd.f32 0.0, %v365
      %v367 = vpop.f32.mrf.mxu0
      %v368 = vpop.f32.mrf.mxu0
      %v369 = vadd.f32 0.0, %v368
      %v370 = vpop.f32.mrf.mxu0
      %371 = vmatprep.mubr.bf16.mxu0 0
      %372 = vmatmul.mubr.bf16.gmra.mxu0 %v203
      %v373 = vpop.f32.mrf.mxu0
      %v374 = vadd.f32 0.0, %v373
      %v375 = vpop.f32.mrf.mxu0
      %v376 = vpop.f32.mrf.mxu0
      %v377 = vadd.f32 0.0, %v376
      %v378 = vpop.f32.mrf.mxu0
      %379 = vmatprep.mubr.bf16.mxu0 0
      %380 = vmatmul.mubr.bf16.gmra.mxu0 %v204
      %v381 = vpop.f32.mrf.mxu0
      %v382 = vadd.f32 0.0, %v381
      %v383 = vpop.f32.mrf.mxu0
      %v384 = vpop.f32.mrf.mxu0
      %v385 = vadd.f32 0.0, %v384
      %v386 = vpop.f32.mrf.mxu0
      %387 = vmatprep.mubr.bf16.mxu0 0
      %388 = vmatmul.mubr.bf16.gmra.mxu0 %v205
      %v389 = vpop.f32.mrf.mxu0
      %v390 = vadd.f32 0.0, %v389
      %v391 = vpop.f32.mrf.mxu0
      %v392 = vpop.f32.mrf.mxu0
      %v393 = vadd.f32 0.0, %v392
      %v394 = vpop.f32.mrf.mxu0
      %395 = vmatprep.mubr.bf16.mxu0 0
      %396 = vmatmul.mubr.bf16.gmra.mxu0 %v206
      %v397 = vpop.f32.mrf.mxu0
      %v398 = vadd.f32 0.0, %v397
      %v399 = vpop.f32.mrf.mxu0
      %v400 = vpop.f32.mrf.mxu0
      %v401 = vadd.f32 0.0, %v400
      %v402 = vpop.f32.mrf.mxu0
      %403 = vmatprep.mubr.bf16.mxu0 0
      %404 = vmatmul.mubr.bf16.gmra.mxu0 %v207
      %v405 = vpop.f32.mrf.mxu0
      %v406 = vadd.f32 0.0, %v405
      %v407 = vpop.f32.mrf.mxu0
      %v408 = vpop.f32.mrf.mxu0
      %v409 = vadd.f32 0.0, %v408
      %v410 = vpop.f32.mrf.mxu0
      %411 = vmatprep.mubr.bf16.mxu0 0
      %412 = vmatmul.mubr.bf16.gmra.mxu0 %v208
      %v413 = vpop.f32.mrf.mxu0
      %v414 = vadd.f32 0.0, %v413
      %v415 = vpop.f32.mrf.mxu0
      %v416 = vpop.f32.mrf.mxu0
      %v417 = vadd.f32 0.0, %v416
      %v418 = vpop.f32.mrf.mxu0
      %419 = vmatprep.mubr.bf16.mxu0 0
      %420 = vmatmul.mubr.bf16.gmra.mxu0 %v209
      %v421 = vpop.f32.mrf.mxu0
      %v422 = vadd.f32 0.0, %v421
      %v423 = vpop.f32.mrf.mxu0
      %v424 = vpop.f32.mrf.mxu0
      %v425 = vadd.f32 0.0, %v424
      %v426 = vpop.f32.mrf.mxu0
      %427 = vmatprep.mubr.bf16.mxu0 0
      %428 = vmatmul.mubr.bf16.gmra.mxu0 %v210
      %v429 = vpop.f32.mrf.mxu0
      %v430 = vadd.f32 0.0, %v429
      %v431 = vpop.f32.mrf.mxu0
      %v432 = vpop.f32.mrf.mxu0
      %v433 = vadd.f32 0.0, %v432
      %v434 = vpop.f32.mrf.mxu0
      %435 = vdwg.mxu0
      %v436 = vpack.c.bf16 %v313, %v310
      %v437 = vpack.c.bf16 %v321, %v318
      %v438 = vpack.c.bf16 %v329, %v326
      %v439 = vpack.c.bf16 %v337, %v334
      %v440 = vpack.c.bf16 %v345, %v342
      %v441 = vpack.c.bf16 %v353, %v350
      %v442 = vpack.c.bf16 %v361, %v358
      %v443 = vpack.c.bf16 %v369, %v366
      %v444 = vpack.c.bf16 %v377, %v374
      %v445 = vpack.c.bf16 %v385, %v382
      %v446 = vpack.c.bf16 %v393, %v390
      %v447 = vpack.c.bf16 %v401, %v398
      %v448 = vpack.c.bf16 %v409, %v406
      %v449 = vpack.c.bf16 %v417, %v414
      %v450 = vpack.c.bf16 %v425, %v422
      %v451 = vpack.c.bf16 %v433, %v430
      %v468 = vunpack.c.l.b16 %v436
      %v469 = vunpack.c.h.b16 %v436
      %v470 = vunpack.c.l.b16 %v437
      %v471 = vunpack.c.h.b16 %v437
      %v472 = vunpack.c.l.b16 %v438
      %v473 = vunpack.c.h.b16 %v438
      %v474 = vunpack.c.l.b16 %v439
      %v475 = vunpack.c.h.b16 %v439
      %v476 = vunpack.c.l.b16 %v440
      %v477 = vunpack.c.h.b16 %v440
      %v478 = vunpack.c.l.b16 %v441
      %v479 = vunpack.c.h.b16 %v441
      %v480 = vunpack.c.l.b16 %v442
      %v481 = vunpack.c.h.b16 %v442
      %v482 = vunpack.c.l.b16 %v443
      %v483 = vunpack.c.h.b16 %v443
      %v484 = vunpack.c.l.b16 %v444
      %v485 = vunpack.c.h.b16 %v444
      %v486 = vunpack.c.l.b16 %v445
      %v487 = vunpack.c.h.b16 %v445
      %v488 = vunpack.c.l.b16 %v446
      %v489 = vunpack.c.h.b16 %v446
      %v490 = vunpack.c.l.b16 %v447
      %v491 = vunpack.c.h.b16 %v447
      %v492 = vunpack.c.l.b16 %v448
      %v493 = vunpack.c.h.b16 %v448
      %v494 = vunpack.c.l.b16 %v449
      %v495 = vunpack.c.h.b16 %v449
      %v496 = vunpack.c.l.b16 %v450
      %v497 = vunpack.c.h.b16 %v450
      %v498 = vunpack.c.l.b16 %v451
      %v499 = vunpack.c.h.b16 %v451
      %v500 = vpack.c.b16 %v468, %v468
      %v501 = vpack.c.b16 %v469, %v469
      %v502 = vpack.c.b16 %v470, %v470
      %v503 = vpack.c.b16 %v471, %v471
      %v504 = vpack.c.b16 %v472, %v472
      %v505 = vpack.c.b16 %v473, %v473
      %v506 = vpack.c.b16 %v474, %v474
      %v507 = vpack.c.b16 %v475, %v475
      %v508 = vpack.c.b16 %v476, %v476
      %v509 = vpack.c.b16 %v477, %v477
      %v510 = vpack.c.b16 %v478, %v478
      %v511 = vpack.c.b16 %v479, %v479
      %v512 = vpack.c.b16 %v480, %v480
      %v513 = vpack.c.b16 %v481, %v481
      %v514 = vpack.c.b16 %v482, %v482
      %v515 = vpack.c.b16 %v483, %v483
      %v516 = vpack.c.b16 %v484, %v484
      %v517 = vpack.c.b16 %v485, %v485
      %v518 = vpack.c.b16 %v486, %v486
      %v519 = vpack.c.b16 %v487, %v487
      %v520 = vpack.c.b16 %v488, %v488
      %v521 = vpack.c.b16 %v489, %v489
      %v522 = vpack.c.b16 %v490, %v490
      %v523 = vpack.c.b16 %v491, %v491
      %v524 = vpack.c.b16 %v492, %v492
      %v525 = vpack.c.b16 %v493, %v493
      %v526 = vpack.c.b16 %v494, %v494
      %v527 = vpack.c.b16 %v495, %v495
      %v528 = vpack.c.b16 %v496, %v496
      %v529 = vpack.c.b16 %v497, %v497
      %v530 = vpack.c.b16 %v498, %v498
      %v531 = vpack.c.b16 %v499, %v499
      %s564 = smul.u32 0, 32
      %s565 = smul.addr %s564, 4
      %s566 = scalar_lea.vmem [#allocation2], %s565
      %567 = vst [vmem:[%s566] sm:$0xf] %v500
      %568 = vst [vmem:[%s566 + $0x4] sm:$0xf] %v501
      %569 = vst [vmem:[%s566 + $0x8] sm:$0xf] %v502
      %570 = vst [vmem:[%s566 + $0xc] sm:$0xf] %v503
      %571 = vst [vmem:[%s566 + $0x10] sm:$0xf] %v504
      %572 = vst [vmem:[%s566 + $0x14] sm:$0xf] %v505
      %573 = vst [vmem:[%s566 + $0x18] sm:$0xf] %v506
      %574 = vst [vmem:[%s566 + $0x1c] sm:$0xf] %v507
      %575 = vst [vmem:[%s566 + $0x20] sm:$0xf] %v508
      %576 = vst [vmem:[%s566 + $0x24] sm:$0xf] %v509
      %577 = vst [vmem:[%s566 + $0x28] sm:$0xf] %v510
      %578 = vst [vmem:[%s566 + $0x2c] sm:$0xf] %v511
      %579 = vst [vmem:[%s566 + $0x30] sm:$0xf] %v512
      %580 = vst [vmem:[%s566 + $0x34] sm:$0xf] %v513
      %581 = vst [vmem:[%s566 + $0x38] sm:$0xf] %v514
      %582 = vst [vmem:[%s566 + $0x3c] sm:$0xf] %v515
      %583 = vst [vmem:[%s566 + $0x40] sm:$0xf] %v516
      %584 = vst [vmem:[%s566 + $0x44] sm:$0xf] %v517
      %585 = vst [vmem:[%s566 + $0x48] sm:$0xf] %v518
      %586 = vst [vmem:[%s566 + $0x4c] sm:$0xf] %v519
      %587 = vst [vmem:[%s566 + $0x50] sm:$0xf] %v520
      %588 = vst [vmem:[%s566 + $0x54] sm:$0xf] %v521
      %589 = vst [vmem:[%s566 + $0x58] sm:$0xf] %v522
      %590 = vst [vmem:[%s566 + $0x5c] sm:$0xf] %v523
      %591 = vst [vmem:[%s566 + $0x60] sm:$0xf] %v524
      %592 = vst [vmem:[%s566 + $0x64] sm:$0xf] %v525
      %593 = vst [vmem:[%s566 + $0x68] sm:$0xf] %v526
      %594 = vst [vmem:[%s566 + $0x6c] sm:$0xf] %v527
      %595 = vst [vmem:[%s566 + $0x70] sm:$0xf] %v528
      %596 = vst [vmem:[%s566 + $0x74] sm:$0xf] %v529
      %597 = vst [vmem:[%s566 + $0x78] sm:$0xf] %v530
      %598 = vst [vmem:[%s566 + $0x7c] sm:$0xf] %v531
    $region21: #{gcn_forward.1} parent=1 // pred_fallthru
      _
    %v599 = vld [vmem:[#allocation3] sm:$0xff]
    %v600 = vld [vmem:[#allocation3 + $0x8] sm:$0xff]
    %v601 = vld [vmem:[#allocation3 + $0x10] sm:$0xff]
    %v602 = vld [vmem:[#allocation3 + $0x18] sm:$0xff]
    %v603 = vld [vmem:[#allocation3 + $0x20] sm:$0xff]
    %v604 = vld [vmem:[#allocation3 + $0x28] sm:$0xff]
    %v605 = vld [vmem:[#allocation3 + $0x30] sm:$0xff]
    %v606 = vld [vmem:[#allocation3 + $0x38] sm:$0xff]
    %v607 = vld [vmem:[#allocation3 + $0x40] sm:$0xff]
    %v608 = vld [vmem:[#allocation3 + $0x48] sm:$0xff]
    %v609 = vld [vmem:[#allocation3 + $0x50] sm:$0xff]
    %v610 = vld [vmem:[#allocation3 + $0x58] sm:$0xff]
    %v611 = vld [vmem:[#allocation3 + $0x60] sm:$0xff]
    %v612 = vld [vmem:[#allocation3 + $0x68] sm:$0xff]
    %v613 = vld [vmem:[#allocation3 + $0x70] sm:$0xff]
    %v614 = vld [vmem:[#allocation3 + $0x78] sm:$0xff]
    %v615 = vld [vmem:[#allocation3 + $0x80] sm:$0xff]
    %v616 = vld [vmem:[#allocation3 + $0x88] sm:$0xff]
    %v617 = vld [vmem:[#allocation3 + $0x90] sm:$0xff]
    %v618 = vld [vmem:[#allocation3 + $0x98] sm:$0xff]
    %v619 = vld [vmem:[#allocation3 + $0xa0] sm:$0xff]
    %v620 = vld [vmem:[#allocation3 + $0xa8] sm:$0xff]
    %v621 = vld [vmem:[#allocation3 + $0xb0] sm:$0xff]
    %v622 = vld [vmem:[#allocation3 + $0xb8] sm:$0xff]
    %v623 = vld [vmem:[#allocation3 + $0xc0] sm:$0xff]
    %v624 = vld [vmem:[#allocation3 + $0xc8] sm:$0xff]
    %v625 = vld [vmem:[#allocation3 + $0xd0] sm:$0xff]
    %v626 = vld [vmem:[#allocation3 + $0xd8] sm:$0xff]
    %v627 = vld [vmem:[#allocation3 + $0xe0] sm:$0xff]
    %v628 = vld [vmem:[#allocation3 + $0xe8] sm:$0xff]
    %v629 = vld [vmem:[#allocation3 + $0xf0] sm:$0xff]
    %v630 = vld [vmem:[#allocation3 + $0xf8] sm:$0xff]
    %v631 = vld [vmem:[%s0] sm:$0xff]
    %v632 = vld [vmem:[%s0 + $0x8] sm:$0xff]
    %v633 = vld [vmem:[%s0 + $0x10] sm:$0xff]
    %v634 = vld [vmem:[%s0 + $0x18] sm:$0xff]
    %v635 = vld [vmem:[%s0 + $0x20] sm:$0xff]
    %v636 = vld [vmem:[%s0 + $0x28] sm:$0xff]
    %v637 = vld [vmem:[%s0 + $0x30] sm:$0xff]
    %v638 = vld [vmem:[%s0 + $0x38] sm:$0xff]
    %v639 = vld [vmem:[%s0 + $0x40] sm:$0xff]
    %v640 = vld [vmem:[%s0 + $0x48] sm:$0xff]
    %v641 = vld [vmem:[%s0 + $0x50] sm:$0xff]
    %v642 = vld [vmem:[%s0 + $0x58] sm:$0xff]
    %v643 = vld [vmem:[%s0 + $0x60] sm:$0xff]
    %v644 = vld [vmem:[%s0 + $0x68] sm:$0xff]
    %v645 = vld [vmem:[%s0 + $0x70] sm:$0xff]
    %v646 = vld [vmem:[%s0 + $0x78] sm:$0xff]
    %v647 = vld [vmem:[%s0 + $0x80] sm:$0xff]
    %v648 = vld [vmem:[%s0 + $0x88] sm:$0xff]
    %v649 = vld [vmem:[%s0 + $0x90] sm:$0xff]
    %v650 = vld [vmem:[%s0 + $0x98] sm:$0xff]
    %v651 = vld [vmem:[%s0 + $0xa0] sm:$0xff]
    %v652 = vld [vmem:[%s0 + $0xa8] sm:$0xff]
    %v653 = vld [vmem:[%s0 + $0xb0] sm:$0xff]
    %v654 = vld [vmem:[%s0 + $0xb8] sm:$0xff]
    %v655 = vld [vmem:[%s0 + $0xc0] sm:$0xff]
    %v656 = vld [vmem:[%s0 + $0xc8] sm:$0xff]
    %v657 = vld [vmem:[%s0 + $0xd0] sm:$0xff]
    %v658 = vld [vmem:[%s0 + $0xd8] sm:$0xff]
    %v659 = vld [vmem:[%s0 + $0xe0] sm:$0xff]
    %v660 = vld [vmem:[%s0 + $0xe8] sm:$0xff]
    %v661 = vld [vmem:[%s0 + $0xf0] sm:$0xff]
    %v662 = vld [vmem:[%s0 + $0xf8] sm:$0xff]
    %s663 = smul.u32 0, 32
    %s664 = smul.addr %s663, 4
    %s665 = scalar_lea.vmem [#allocation2], %s664
    %v666 = vld [vmem:[%s665] sm:$0xf]
    %v667 = vld [vmem:[%s665 + $0x4] sm:$0xf]
    %v668 = vld [vmem:[%s665 + $0x8] sm:$0xf]
    %v669 = vld [vmem:[%s665 + $0xc] sm:$0xf]
    %v670 = vld [vmem:[%s665 + $0x10] sm:$0xf]
    %v671 = vld [vmem:[%s665 + $0x14] sm:$0xf]
    %v672 = vld [vmem:[%s665 + $0x18] sm:$0xf]
    %v673 = vld [vmem:[%s665 + $0x1c] sm:$0xf]
    %v674 = vld [vmem:[%s665 + $0x20] sm:$0xf]
    %v675 = vld [vmem:[%s665 + $0x24] sm:$0xf]
    %v676 = vld [vmem:[%s665 + $0x28] sm:$0xf]
    %v677 = vld [vmem:[%s665 + $0x2c] sm:$0xf]
    %v678 = vld [vmem:[%s665 + $0x30] sm:$0xf]
    %v679 = vld [vmem:[%s665 + $0x34] sm:$0xf]
    %v680 = vld [vmem:[%s665 + $0x38] sm:$0xf]
    %v681 = vld [vmem:[%s665 + $0x3c] sm:$0xf]
    %v682 = vld [vmem:[%s665 + $0x40] sm:$0xf]
    %v683 = vld [vmem:[%s665 + $0x44] sm:$0xf]
    %v684 = vld [vmem:[%s665 + $0x48] sm:$0xf]
    %v685 = vld [vmem:[%s665 + $0x4c] sm:$0xf]
    %v686 = vld [vmem:[%s665 + $0x50] sm:$0xf]
    %v687 = vld [vmem:[%s665 + $0x54] sm:$0xf]
    %v688 = vld [vmem:[%s665 + $0x58] sm:$0xf]
    %v689 = vld [vmem:[%s665 + $0x5c] sm:$0xf]
    %v690 = vld [vmem:[%s665 + $0x60] sm:$0xf]
    %v691 = vld [vmem:[%s665 + $0x64] sm:$0xf]
    %v692 = vld [vmem:[%s665 + $0x68] sm:$0xf]
    %v693 = vld [vmem:[%s665 + $0x6c] sm:$0xf]
    %v694 = vld [vmem:[%s665 + $0x70] sm:$0xf]
    %v695 = vld [vmem:[%s665 + $0x74] sm:$0xf]
    %v696 = vld [vmem:[%s665 + $0x78] sm:$0xf]
    %v697 = vld [vmem:[%s665 + $0x7c] sm:$0xf]
    %v730 = vunpack.c.l.b16 %v631
    %v731 = vunpack.c.h.b16 %v631
    %v732 = vunpack.c.l.b16 %v632
    %v733 = vunpack.c.h.b16 %v632
    %v734 = vunpack.c.l.b16 %v633
    %v735 = vunpack.c.h.b16 %v633
    %v736 = vunpack.c.l.b16 %v634
    %v737 = vunpack.c.h.b16 %v634
    %v738 = vunpack.c.l.b16 %v635
    %v739 = vunpack.c.h.b16 %v635
    %v740 = vunpack.c.l.b16 %v636
    %v741 = vunpack.c.h.b16 %v636
    %v742 = vunpack.c.l.b16 %v637
    %v743 = vunpack.c.h.b16 %v637
    %v744 = vunpack.c.l.b16 %v638
    %v745 = vunpack.c.h.b16 %v638
    %v746 = vunpack.c.l.b16 %v639
    %v747 = vunpack.c.h.b16 %v639
    %v748 = vunpack.c.l.b16 %v640
    %v749 = vunpack.c.h.b16 %v640
    %v750 = vunpack.c.l.b16 %v641
    %v751 = vunpack.c.h.b16 %v641
    %v752 = vunpack.c.l.b16 %v642
    %v753 = vunpack.c.h.b16 %v642
    %v754 = vunpack.c.l.b16 %v643
    %v755 = vunpack.c.h.b16 %v643
    %v756 = vunpack.c.l.b16 %v644
    %v757 = vunpack.c.h.b16 %v644
    %v758 = vunpack.c.l.b16 %v645
    %v759 = vunpack.c.h.b16 %v645
    %v760 = vunpack.c.l.b16 %v646
    %v761 = vunpack.c.h.b16 %v646
    %v762 = vunpack.c.l.b16 %v647
    %v763 = vunpack.c.h.b16 %v647
    %v764 = vunpack.c.l.b16 %v648
    %v765 = vunpack.c.h.b16 %v648
    %v766 = vunpack.c.l.b16 %v649
    %v767 = vunpack.c.h.b16 %v649
    %v768 = vunpack.c.l.b16 %v650
    %v769 = vunpack.c.h.b16 %v650
    %v770 = vunpack.c.l.b16 %v651
    %v771 = vunpack.c.h.b16 %v651
    %v772 = vunpack.c.l.b16 %v652
    %v773 = vunpack.c.h.b16 %v652
    %v774 = vunpack.c.l.b16 %v653
    %v775 = vunpack.c.h.b16 %v653
    %v776 = vunpack.c.l.b16 %v654
    %v777 = vunpack.c.h.b16 %v654
    %v778 = vunpack.c.l.b16 %v655
    %v779 = vunpack.c.h.b16 %v655
    %v780 = vunpack.c.l.b16 %v656
    %v781 = vunpack.c.h.b16 %v656
    %v782 = vunpack.c.l.b16 %v657
    %v783 = vunpack.c.h.b16 %v657
    %v784 = vunpack.c.l.b16 %v658
    %v785 = vunpack.c.h.b16 %v658
    %v786 = vunpack.c.l.b16 %v659
    %v787 = vunpack.c.h.b16 %v659
    %v788 = vunpack.c.l.b16 %v660
    %v789 = vunpack.c.h.b16 %v660
    %v790 = vunpack.c.l.b16 %v661
    %v791 = vunpack.c.h.b16 %v661
    %v792 = vunpack.c.l.b16 %v662
    %v793 = vunpack.c.h.b16 %v662
    %v794 = vpack.c.b16 %v732, %v730
    %v795 = vpack.c.b16 %v733, %v731
    %v796 = vpack.c.b16 %v736, %v734
    %v797 = vpack.c.b16 %v737, %v735
    %v798 = vpack.c.b16 %v740, %v738
    %v799 = vpack.c.b16 %v741, %v739
    %v800 = vpack.c.b16 %v744, %v742
    %v801 = vpack.c.b16 %v745, %v743
    %v802 = vpack.c.b16 %v748, %v746
    %v803 = vpack.c.b16 %v749, %v747
    %v804 = vpack.c.b16 %v752, %v750
    %v805 = vpack.c.b16 %v753, %v751
    %v806 = vpack.c.b16 %v756, %v754
    %v807 = vpack.c.b16 %v757, %v755
    %v808 = vpack.c.b16 %v760, %v758
    %v809 = vpack.c.b16 %v761, %v759
    %v810 = vpack.c.b16 %v764, %v762
    %v811 = vpack.c.b16 %v765, %v763
    %v812 = vpack.c.b16 %v768, %v766
    %v813 = vpack.c.b16 %v769, %v767
    %v814 = vpack.c.b16 %v772, %v770
    %v815 = vpack.c.b16 %v773, %v771
    %v816 = vpack.c.b16 %v776, %v774
    %v817 = vpack.c.b16 %v777, %v775
    %v818 = vpack.c.b16 %v780, %v778
    %v819 = vpack.c.b16 %v781, %v779
    %v820 = vpack.c.b16 %v784, %v782
    %v821 = vpack.c.b16 %v785, %v783
    %v822 = vpack.c.b16 %v788, %v786
    %v823 = vpack.c.b16 %v789, %v787
    %v824 = vpack.c.b16 %v792, %v790
    %v825 = vpack.c.b16 %v793, %v791
    %v890 = vunpack.c.l.b16 %v666
    %v891 = vunpack.c.l.b16 %v667
    %v892 = vunpack.c.l.b16 %v668
    %v893 = vunpack.c.l.b16 %v669
    %v894 = vunpack.c.l.b16 %v670
    %v895 = vunpack.c.l.b16 %v671
    %v896 = vunpack.c.l.b16 %v672
    %v897 = vunpack.c.l.b16 %v673
    %v898 = vunpack.c.l.b16 %v674
    %v899 = vunpack.c.l.b16 %v675
    %v900 = vunpack.c.l.b16 %v676
    %v901 = vunpack.c.l.b16 %v677
    %v902 = vunpack.c.l.b16 %v678
    %v903 = vunpack.c.l.b16 %v679
    %v904 = vunpack.c.l.b16 %v680
    %v905 = vunpack.c.l.b16 %v681
    %v906 = vunpack.c.l.b16 %v682
    %v907 = vunpack.c.l.b16 %v683
    %v908 = vunpack.c.l.b16 %v684
    %v909 = vunpack.c.l.b16 %v685
    %v910 = vunpack.c.l.b16 %v686
    %v911 = vunpack.c.l.b16 %v687
    %v912 = vunpack.c.l.b16 %v688
    %v913 = vunpack.c.l.b16 %v689
    %v914 = vunpack.c.l.b16 %v690
    %v915 = vunpack.c.l.b16 %v691
    %v916 = vunpack.c.l.b16 %v692
    %v917 = vunpack.c.l.b16 %v693
    %v918 = vunpack.c.l.b16 %v694
    %v919 = vunpack.c.l.b16 %v695
    %v920 = vunpack.c.l.b16 %v696
    %v921 = vunpack.c.l.b16 %v697
    %v922 = vpack.c.b16 %v891, %v890
    %v923 = vpack.c.b16 %v893, %v892
    %v924 = vpack.c.b16 %v895, %v894
    %v925 = vpack.c.b16 %v897, %v896
    %v926 = vpack.c.b16 %v899, %v898
    %v927 = vpack.c.b16 %v901, %v900
    %v928 = vpack.c.b16 %v903, %v902
    %v929 = vpack.c.b16 %v905, %v904
    %v930 = vpack.c.b16 %v907, %v906
    %v931 = vpack.c.b16 %v909, %v908
    %v932 = vpack.c.b16 %v911, %v910
    %v933 = vpack.c.b16 %v913, %v912
    %v934 = vpack.c.b16 %v915, %v914
    %v935 = vpack.c.b16 %v917, %v916
    %v936 = vpack.c.b16 %v919, %v918
    %v937 = vpack.c.b16 %v921, %v920
    %954 = vmatprep.subr.bf16.mxu0 0
    %955 = vmatpush1.bf16.msra.mxu0 %v929
    %956 = vmatprep.subr.bf16.mxu0 0
    %957 = vmatpush1.bf16.msra.mxu0 %v928
    %958 = vmatprep.subr.bf16.mxu0 0
    %959 = vmatpush1.bf16.msra.mxu0 %v927
    %960 = vmatprep.subr.bf16.mxu0 0
    %961 = vmatpush1.bf16.msra.mxu0 %v926
    %962 = vmatprep.subr.bf16.mxu0 0
    %963 = vmatpush1.bf16.msra.mxu0 %v925
    %964 = vmatprep.subr.bf16.mxu0 0
    %965 = vmatpush1.bf16.msra.mxu0 %v924
    %966 = vmatprep.subr.bf16.mxu0 0
    %967 = vmatpush1.bf16.msra.mxu0 %v923
    %968 = vmatprep.subr.bf16.mxu0 0
    %969 = vmatpush1.bf16.msra.mxu0 %v922
    %970 = vmatprep.subr.bf16.mxu0 0
    %971 = vmatpush2.bf16.msra.mxu0 %v937
    %972 = vmatprep.subr.bf16.mxu0 0
    %973 = vmatpush2.bf16.msra.mxu0 %v936
    %974 = vmatprep.subr.bf16.mxu0 0
    %975 = vmatpush2.bf16.msra.mxu0 %v935
    %976 = vmatprep.subr.bf16.mxu0 0
    %977 = vmatpush2.bf16.msra.mxu0 %v934
    %978 = vmatprep.subr.bf16.mxu0 0
    %979 = vmatpush2.bf16.msra.mxu0 %v933
    %980 = vmatprep.subr.bf16.mxu0 0
    %981 = vmatpush2.bf16.msra.mxu0 %v932
    %982 = vmatprep.subr.bf16.mxu0 0
    %983 = vmatpush2.bf16.msra.mxu0 %v931
    %984 = vmatprep.subr.bf16.mxu0 0
    %985 = vmatpush2.bf16.msra.mxu0 %v930
    %986 = vmatprep.mubr.bf16.mxu0 %v795
    %987 = vmatmul.mubr.bf16.gmra.mxu0 %v794
    %v988 = vpop.f32.mrf.mxu0
    %v989 = vadd.f32 0.0, %v988
    %v990 = vpop.f32.mrf.mxu0
    %v991 = vpop.f32.mrf.mxu0
    %v992 = vadd.f32 0.0, %v991
    %v993 = vpop.f32.mrf.mxu0
    %994 = vmatprep.mubr.bf16.mxu0 %v797
    %995 = vmatmul.mubr.bf16.gmra.mxu0 %v796
    %v996 = vpop.f32.mrf.mxu0
    %v997 = vadd.f32 0.0, %v996
    %v998 = vpop.f32.mrf.mxu0
    %v999 = vpop.f32.mrf.mxu0
    %v1000 = vadd.f32 0.0, %v999
    %v1001 = vpop.f32.mrf.mxu0
    %1002 = vmatprep.mubr.bf16.mxu0 %v799
    %1003 = vmatmul.mubr.bf16.gmra.mxu0 %v798
    %v1004 = vpop.f32.mrf.mxu0
    %v1005 = vadd.f32 0.0, %v1004
    %v1006 = vpop.f32.mrf.mxu0
    %v1007 = vpop.f32.mrf.mxu0
    %v1008 = vadd.f32 0.0, %v1007
    %v1009 = vpop.f32.mrf.mxu0
    %1010 = vmatprep.mubr.bf16.mxu0 %v801
    %1011 = vmatmul.mubr.bf16.gmra.mxu0 %v800
    %v1012 = vpop.f32.mrf.mxu0
    %v1013 = vadd.f32 0.0, %v1012
    %v1014 = vpop.f32.mrf.mxu0
    %v1015 = vpop.f32.mrf.mxu0
    %v1016 = vadd.f32 0.0, %v1015
    %v1017 = vpop.f32.mrf.mxu0
    %1018 = vmatprep.mubr.bf16.mxu0 %v803
    %1019 = vmatmul.mubr.bf16.gmra.mxu0 %v802
    %v1020 = vpop.f32.mrf.mxu0
    %v1021 = vadd.f32 0.0, %v1020
    %v1022 = vpop.f32.mrf.mxu0
    %v1023 = vpop.f32.mrf.mxu0
    %v1024 = vadd.f32 0.0, %v1023
    %v1025 = vpop.f32.mrf.mxu0
    %1026 = vmatprep.mubr.bf16.mxu0 %v805
    %1027 = vmatmul.mubr.bf16.gmra.mxu0 %v804
    %v1028 = vpop.f32.mrf.mxu0
    %v1029 = vadd.f32 0.0, %v1028
    %v1030 = vpop.f32.mrf.mxu0
    %v1031 = vpop.f32.mrf.mxu0
    %v1032 = vadd.f32 0.0, %v1031
    %v1033 = vpop.f32.mrf.mxu0
    %1034 = vmatprep.mubr.bf16.mxu0 %v807
    %1035 = vmatmul.mubr.bf16.gmra.mxu0 %v806
    %v1036 = vpop.f32.mrf.mxu0
    %v1037 = vadd.f32 0.0, %v1036
    %v1038 = vpop.f32.mrf.mxu0
    %v1039 = vpop.f32.mrf.mxu0
    %v1040 = vadd.f32 0.0, %v1039
    %v1041 = vpop.f32.mrf.mxu0
    %1042 = vmatprep.mubr.bf16.mxu0 %v809
    %1043 = vmatmul.mubr.bf16.gmra.mxu0 %v808
    %v1044 = vpop.f32.mrf.mxu0
    %v1045 = vadd.f32 0.0, %v1044
    %v1046 = vpop.f32.mrf.mxu0
    %v1047 = vpop.f32.mrf.mxu0
    %v1048 = vadd.f32 0.0, %v1047
    %v1049 = vpop.f32.mrf.mxu0
    %1050 = vmatprep.mubr.bf16.mxu0 %v811
    %1051 = vmatmul.mubr.bf16.gmra.mxu0 %v810
    %v1052 = vpop.f32.mrf.mxu0
    %v1053 = vadd.f32 0.0, %v1052
    %v1054 = vpop.f32.mrf.mxu0
    %v1055 = vpop.f32.mrf.mxu0
    %v1056 = vadd.f32 0.0, %v1055
    %v1057 = vpop.f32.mrf.mxu0
    %1058 = vmatprep.mubr.bf16.mxu0 %v813
    %1059 = vmatmul.mubr.bf16.gmra.mxu0 %v812
    %v1060 = vpop.f32.mrf.mxu0
    %v1061 = vadd.f32 0.0, %v1060
    %v1062 = vpop.f32.mrf.mxu0
    %v1063 = vpop.f32.mrf.mxu0
    %v1064 = vadd.f32 0.0, %v1063
    %v1065 = vpop.f32.mrf.mxu0
    %1066 = vmatprep.mubr.bf16.mxu0 %v815
    %1067 = vmatmul.mubr.bf16.gmra.mxu0 %v814
    %v1068 = vpop.f32.mrf.mxu0
    %v1069 = vadd.f32 0.0, %v1068
    %v1070 = vpop.f32.mrf.mxu0
    %v1071 = vpop.f32.mrf.mxu0
    %v1072 = vadd.f32 0.0, %v1071
    %v1073 = vpop.f32.mrf.mxu0
    %1074 = vmatprep.mubr.bf16.mxu0 %v817
    %1075 = vmatmul.mubr.bf16.gmra.mxu0 %v816
    %v1076 = vpop.f32.mrf.mxu0
    %v1077 = vadd.f32 0.0, %v1076
    %v1078 = vpop.f32.mrf.mxu0
    %v1079 = vpop.f32.mrf.mxu0
    %v1080 = vadd.f32 0.0, %v1079
    %v1081 = vpop.f32.mrf.mxu0
    %1082 = vmatprep.mubr.bf16.mxu0 %v819
    %1083 = vmatmul.mubr.bf16.gmra.mxu0 %v818
    %v1084 = vpop.f32.mrf.mxu0
    %v1085 = vadd.f32 0.0, %v1084
    %v1086 = vpop.f32.mrf.mxu0
    %v1087 = vpop.f32.mrf.mxu0
    %v1088 = vadd.f32 0.0, %v1087
    %v1089 = vpop.f32.mrf.mxu0
    %1090 = vmatprep.mubr.bf16.mxu0 %v821
    %1091 = vmatmul.mubr.bf16.gmra.mxu0 %v820
    %v1092 = vpop.f32.mrf.mxu0
    %v1093 = vadd.f32 0.0, %v1092
    %v1094 = vpop.f32.mrf.mxu0
    %v1095 = vpop.f32.mrf.mxu0
    %v1096 = vadd.f32 0.0, %v1095
    %v1097 = vpop.f32.mrf.mxu0
    %1098 = vmatprep.mubr.bf16.mxu0 %v823
    %1099 = vmatmul.mubr.bf16.gmra.mxu0 %v822
    %v1100 = vpop.f32.mrf.mxu0
    %v1101 = vadd.f32 0.0, %v1100
    %v1102 = vpop.f32.mrf.mxu0
    %v1103 = vpop.f32.mrf.mxu0
    %v1104 = vadd.f32 0.0, %v1103
    %v1105 = vpop.f32.mrf.mxu0
    %1106 = vmatprep.mubr.bf16.mxu0 %v825
    %1107 = vmatmul.mubr.bf16.gmra.mxu0 %v824
    %v1108 = vpop.f32.mrf.mxu0
    %v1109 = vadd.f32 0.0, %v1108
    %v1110 = vpop.f32.mrf.mxu0
    %v1111 = vpop.f32.mrf.mxu0
    %v1112 = vadd.f32 0.0, %v1111
    %v1113 = vpop.f32.mrf.mxu0
    %1114 = vdwg.mxu0
    %v1115 = vadd.f32 %v599, %v989
    %v1116 = vadd.f32 %v600, %v992
    %v1117 = vadd.f32 %v601, %v997
    %v1118 = vadd.f32 %v602, %v1000
    %v1119 = vadd.f32 %v603, %v1005
    %v1120 = vadd.f32 %v604, %v1008
    %v1121 = vadd.f32 %v605, %v1013
    %v1122 = vadd.f32 %v606, %v1016
    %v1123 = vadd.f32 %v607, %v1021
    %v1124 = vadd.f32 %v608, %v1024
    %v1125 = vadd.f32 %v609, %v1029
    %v1126 = vadd.f32 %v610, %v1032
    %v1127 = vadd.f32 %v611, %v1037
    %v1128 = vadd.f32 %v612, %v1040
    %v1129 = vadd.f32 %v613, %v1045
    %v1130 = vadd.f32 %v614, %v1048
    %v1131 = vadd.f32 %v615, %v1053
    %v1132 = vadd.f32 %v616, %v1056
    %v1133 = vadd.f32 %v617, %v1061
    %v1134 = vadd.f32 %v618, %v1064
    %v1135 = vadd.f32 %v619, %v1069
    %v1136 = vadd.f32 %v620, %v1072
    %v1137 = vadd.f32 %v621, %v1077
    %v1138 = vadd.f32 %v622, %v1080
    %v1139 = vadd.f32 %v623, %v1085
    %v1140 = vadd.f32 %v624, %v1088
    %v1141 = vadd.f32 %v625, %v1093
    %v1142 = vadd.f32 %v626, %v1096
    %v1143 = vadd.f32 %v627, %v1101
    %v1144 = vadd.f32 %v628, %v1104
    %v1145 = vadd.f32 %v629, %v1109
    %v1146 = vadd.f32 %v630, %v1112
    %1147 = vst [vmem:[#allocation3] sm:$0xff] %v1115
    %1148 = vst [vmem:[#allocation3 + $0x8] sm:$0xff] %v1116
    %1149 = vst [vmem:[#allocation3 + $0x10] sm:$0xff] %v1117
    %1150 = vst [vmem:[#allocation3 + $0x18] sm:$0xff] %v1118
    %1151 = vst [vmem:[#allocation3 + $0x20] sm:$0xff] %v1119
    %1152 = vst [vmem:[#allocation3 + $0x28] sm:$0xff] %v1120
    %1153 = vst [vmem:[#allocation3 + $0x30] sm:$0xff] %v1121
    %1154 = vst [vmem:[#allocation3 + $0x38] sm:$0xff] %v1122
    %1155 = vst [vmem:[#allocation3 + $0x40] sm:$0xff] %v1123
    %1156 = vst [vmem:[#allocation3 + $0x48] sm:$0xff] %v1124
    %1157 = vst [vmem:[#allocation3 + $0x50] sm:$0xff] %v1125
    %1158 = vst [vmem:[#allocation3 + $0x58] sm:$0xff] %v1126
    %1159 = vst [vmem:[#allocation3 + $0x60] sm:$0xff] %v1127
    %1160 = vst [vmem:[#allocation3 + $0x68] sm:$0xff] %v1128
    %1161 = vst [vmem:[#allocation3 + $0x70] sm:$0xff] %v1129
    %1162 = vst [vmem:[#allocation3 + $0x78] sm:$0xff] %v1130
    %1163 = vst [vmem:[#allocation3 + $0x80] sm:$0xff] %v1131
    %1164 = vst [vmem:[#allocation3 + $0x88] sm:$0xff] %v1132
    %1165 = vst [vmem:[#allocation3 + $0x90] sm:$0xff] %v1133
    %1166 = vst [vmem:[#allocation3 + $0x98] sm:$0xff] %v1134
    %1167 = vst [vmem:[#allocation3 + $0xa0] sm:$0xff] %v1135
    %1168 = vst [vmem:[#allocation3 + $0xa8] sm:$0xff] %v1136
    %1169 = vst [vmem:[#allocation3 + $0xb0] sm:$0xff] %v1137
    %1170 = vst [vmem:[#allocation3 + $0xb8] sm:$0xff] %v1138
    %1171 = vst [vmem:[#allocation3 + $0xc0] sm:$0xff] %v1139
    %1172 = vst [vmem:[#allocation3 + $0xc8] sm:$0xff] %v1140
    %1173 = vst [vmem:[#allocation3 + $0xd0] sm:$0xff] %v1141
    %1174 = vst [vmem:[#allocation3 + $0xd8] sm:$0xff] %v1142
    %1175 = vst [vmem:[#allocation3 + $0xe0] sm:$0xff] %v1143
    %1176 = vst [vmem:[#allocation3 + $0xe8] sm:$0xff] %v1144
    %1177 = vst [vmem:[#allocation3 + $0xf0] sm:$0xff] %v1145
    %1178 = vst [vmem:[#allocation3 + $0xf8] sm:$0xff] %v1146
    // Predicated region
    $region22: #{gcn_forward.1} parent=1 // pred_check
      _
    $region23: #{gcn_forward.1} parent=1 // pred_check_branch
      %1180 = sbr.rel (0) target = $region25
    $region24: #{gcn_forward.1} parent=1 // pred_region
      %s1182 = ssub.s32 4096, 4096
      %1183 = vsyncadd [#allocation4], %s1182
      %s1184 = sshll.u32 [#allocation3], 4
      %s1185 = int_to_ptr.vmem [resolvable:$true] %s1184
      %1190 = dma.vmem_to_hbm [thread:$0]  %s1185, 4096, %s3, [#allocation4], 128, 128, 8
    $region25: #{gcn_forward.1} parent=1 // pred_fallthru
      _
    // Predicated region
    $region26: #{gcn_forward.1} parent=1 // pred_check
      _
    $region27: #{gcn_forward.1} parent=1 // pred_check_branch
      %1192 = sbr.rel (0) target = $region29
    $region28: #{gcn_forward.1} parent=1 // pred_region
      %1193 = dma.done [#allocation4], 4096
    $region29: #{gcn_forward.1} parent=1 // pred_fallthru
      _
    %1194 = vsyncpa [#allocation4], 1

</llo_original>
